<compile_context>
chip_gen: v5e
topology: v5e:2x2
jax: 0.10.0
libtpu: 0.0.40
codegen_flags: <defaults>
</compile_context>

<pallas_src>
import jax
import jax.numpy as jnp
from jax import lax
from jax.experimental import pallas as pl
from jax.experimental.pallas import tpu as pltpu


def make_convblock_kernel(p_total, eps):
    inv_p = 1.0 / float(p_total)

    def kernel(w_ref, g_ref, beta_ref, pe_ref, po_ref, o_ref,
               sum_sc, ssq_sc, scale_sc, shift_sc):
        # w_ref    : (Cout, Kp)   conv weights, im2col layout (K zero-padded to Kp)
        # g_ref    : (Cout, 1)    BN gamma
        # beta_ref : (Cout, 1)    BN beta
        # pe_ref   : (Kp, Pt)     im2col patches, even conv-output columns
        # po_ref   : (Kp, Pt)     im2col patches, odd  conv-output columns
        # o_ref    : (Cout, Pt)   pooled output tile (lane-dense, P on lanes)
        # *_sc     : (Cout, 1)    VMEM scratch persisting across the grid
        p = pl.program_id(0)          # 0 = stats pass, 1 = apply pass
        t = pl.program_id(1)
        n_tiles = pl.num_programs(1)

        # ---- Conv2d as one fused MXU matmul per pool parity: (Cout,K) @ (K,Pt).
        # Conv bias is intentionally NOT added: it cancels exactly under the
        # train-mode BN mean subtraction.
        acc_e = jnp.dot(w_ref[...], pe_ref[...], preferred_element_type=jnp.float32)
        acc_o = jnp.dot(w_ref[...], po_ref[...], preferred_element_type=jnp.float32)

        # ---- Pass 0: accumulate per-channel sum / sum-of-squares over all tiles.
        @pl.when(p == 0)
        def _stats_pass():
            @pl.when(t == 0)
            def _init():
                sum_sc[...] = jnp.zeros_like(sum_sc)
                ssq_sc[...] = jnp.zeros_like(ssq_sc)

            sum_sc[...] += (jnp.sum(acc_e, axis=1, keepdims=True)
                            + jnp.sum(acc_o, axis=1, keepdims=True))
            ssq_sc[...] += (jnp.sum(acc_e * acc_e, axis=1, keepdims=True)
                            + jnp.sum(acc_o * acc_o, axis=1, keepdims=True))

            @pl.when(t == n_tiles - 1)
            def _finalize():
                mean = sum_sc[...] * inv_p
                # Single-pass E[x^2]-E[x]^2 (fp32).  Fine at ConvBlock activation
                # magnitudes; switch to a two-pass form if inputs are huge.
                var = ssq_sc[...] * inv_p - mean * mean
                scale = g_ref[...] * lax.rsqrt(var + eps)
                scale_sc[...] = scale
                shift_sc[...] = beta_ref[...] - mean * scale

        # ---- Pass 1: folded BN scale/shift + ReLU + MaxPool(1,2), one bulk store.
        @pl.when(p == 1)
        def _apply_pass():
            scale = scale_sc[...]     # (Cout, 1) -> sublane-aligned broadcast
            shift = shift_sc[...]
            ye = jnp.maximum(acc_e * scale + shift, 0.0)
            yo = jnp.maximum(acc_o * scale + shift, 0.0)
            o_ref[...] = jnp.maximum(ye, yo).astype(o_ref.dtype)

    return kernel


def _padded_vmem_bytes(shape, itemsize=4):
    """Bytes of a VMEM buffer with last two dims padded to the (8,128) vreg tile."""
    lead = 1
    for d in shape[:-2]:
        lead *= int(d)
    sub = -(-int(shape[-2]) // 8) * 8
    lane = -(-int(shape[-1]) // 128) * 128
    return lead * sub * lane * itemsize


def conv_block_forward(x_nchw, w_oihw, bias, gamma, beta, *, eps=1e-5, p_tile=None):
    """PyTorch-equivalent ConvBlock forward (max_pool=True, max_pool_factor=1.0).

    Inputs/outputs are NCHW, matching torch.nn.Conv2d conventions.
    `bias` is accepted for API parity but is mathematically cancelled by the
    train-mode BatchNorm mean subtraction, so it is not used.
    """
    del bias  # cancelled exactly by train-mode BN mean subtraction
    # TODO(synk): running_mean/running_var bookkeeping (stateful buffers) and
    # eval-mode BN / max_pool=False / max_pool_factor != 1.0 variants are not
    # emitted; this implements the module's default forward path.
    N, Cin, H, W = x_nchw.shape
    Cout, _, KH, KW = w_oihw.shape
    Hc = H + 2 - KH + 1                 # conv output H (padding=1, stride 1)
    Wc = W + 2 - KW + 1                 # conv output W
    assert Wc % 2 == 0, (
        "TODO(synk): odd conv-output width (last column enters BN stats but is "
        "dropped by the pool) is not supported by the fused even/odd layout.")
    Wo = Wc // 2
    Pout = N * Hc * Wo                  # pooled-output pixel count (lane axis)
    Kdim = KH * KW * Cin                # im2col contraction size
    Kp = -(-Kdim // 8) * 8              # pad contraction dim to a sublane multiple

    # ---- Wrapper-side im2col in the (K, P) layout, split by pool-column parity.
    x = x_nchw.astype(jnp.float32)
    xp = jnp.pad(x, ((0, 0), (0, 0), (1, 1), (1, 1)))            # padding=1
    taps = [xp[:, :, kh:kh + Hc, kw:kw + Wc]
            for kh in range(KH) for kw in range(KW)]             # each (N,Cin,Hc,Wc)
    pat = jnp.stack(taps, axis=1)                                # (N, KH*KW, Cin, Hc, Wc)
    pat = jnp.transpose(pat, (1, 2, 0, 3, 4))                    # (KH*KW, Cin, N, Hc, Wc)
    pat = pat.reshape(Kdim, N, Hc, Wc)[..., :2 * Wo]             # (K, N, Hc, 2*Wo)
    p_even = pat[..., 0::2].reshape(Kdim, Pout)                  # (K, P) even columns
    p_odd = pat[..., 1::2].reshape(Kdim, Pout)                   # (K, P) odd  columns
    if Kp != Kdim:
        p_even = jnp.pad(p_even, ((0, Kp - Kdim), (0, 0)))
        p_odd = jnp.pad(p_odd, ((0, Kp - Kdim), (0, 0)))

    # Weights to (Cout, K) with k = (kh*KW + kw)*Cin + cin, matching the patches.
    w_mat = jnp.transpose(w_oihw.astype(jnp.float32), (0, 2, 3, 1)).reshape(Cout, Kdim)
    if Kp != Kdim:
        w_mat = jnp.pad(w_mat, ((0, 0), (0, Kp - Kdim)))
    gamma2 = gamma.reshape(Cout, 1).astype(jnp.float32)
    beta2 = beta.reshape(Cout, 1).astype(jnp.float32)

    # ---- Choose the P-tile (multiple of 128, or the full extent).
    if p_tile is None:
        if Pout % 128 == 0:
            p_tile = 128
            while p_tile * 2 <= min(Pout, 2048) and Pout % (p_tile * 2) == 0:
                p_tile *= 2
        else:
            p_tile = Pout
    assert Pout % p_tile == 0 and (p_tile % 128 == 0 or p_tile == Pout)
    n_tiles = Pout // p_tile
    grid = (2, n_tiles)                 # (pass, P-tile)

    # ---- Scoped-VMEM budget sized from the actual (padded, double-buffered) buffers.
    buf_bytes = (
        2 * (2 * _padded_vmem_bytes((Kp, p_tile)) + _padded_vmem_bytes((Cout, p_tile)))
        + 2 * (_padded_vmem_bytes((Cout, Kp)) + 2 * _padded_vmem_bytes((Cout, 1)))
        + 4 * _padded_vmem_bytes((Cout, 1)))
    vmem_limit = int(min(max(4 * buf_bytes, 8 * 1024 * 1024), 96 * 1024 * 1024))

    cost = pl.CostEstimate(
        flops=int(8 * Cout * Kp * Pout),                      # 2 passes x 2 parities
        transcendentals=int(Cout),                            # rsqrt in finalize
        bytes_accessed=int(2 * 2 * Kp * Pout * 4 + Cout * Pout * 4 + Cout * Kp * 4))

    out_flat = pl.pallas_call(
        make_convblock_kernel(N * Hc * 2 * Wo, eps),
        out_shape=jax.ShapeDtypeStruct((Cout, Pout), jnp.float32),
        grid_spec=pltpu.PrefetchScalarGridSpec(
            num_scalar_prefetch=0,
            grid=grid,
            in_specs=[
                pl.BlockSpec((Cout, Kp), lambda p, t: (0, 0)),      # weights (resident)
                pl.BlockSpec((Cout, 1), lambda p, t: (0, 0)),       # gamma
                pl.BlockSpec((Cout, 1), lambda p, t: (0, 0)),       # beta
                pl.BlockSpec((Kp, p_tile), lambda p, t: (0, t)),    # patches even
                pl.BlockSpec((Kp, p_tile), lambda p, t: (0, t)),    # patches odd
            ],
            # During pass 0 the output block index stays at 0 (nothing is written),
            # so no garbage ever reaches HBM; pass 1 writes each tile exactly once.
            out_specs=pl.BlockSpec((Cout, p_tile), lambda p, t: (0, t * p)),
            scratch_shapes=[
                pltpu.VMEM((Cout, 1), jnp.float32),   # per-channel sum
                pltpu.VMEM((Cout, 1), jnp.float32),   # per-channel sum of squares
                pltpu.VMEM((Cout, 1), jnp.float32),   # folded BN scale
                pltpu.VMEM((Cout, 1), jnp.float32),   # folded BN shift
            ]),
        compiler_params=pltpu.CompilerParams(
            # Both axes are sequential: pass 1 depends on pass-0 scratch, and the
            # tile axis carries the BN-stats accumulation.
            # TODO(synk): for v7x megacore, split into two pallas_calls so the
            # tile axis can be marked "parallel".
            dimension_semantics=("arbitrary", "arbitrary"),
            vmem_limit_bytes=vmem_limit),
        cost_estimate=cost,
    )(w_mat, gamma2, beta2, p_even, p_odd)

    out = out_flat.reshape(Cout, N, Hc, Wo)          # columns are (n, h, wo) row-major
    return jnp.transpose(out, (1, 0, 2, 3))          # -> NCHW (N, Cout, Hc, Wo)


def reference_forward(x_nchw, w_oihw, bias, gamma, beta, eps=1e-5):
    """Pure-JAX reference of the same forward pass (for correctness check)."""
    y = lax.conv_general_dilated(
        x_nchw.astype(jnp.float32), w_oihw.astype(jnp.float32),
        window_strides=(1, 1), padding=((1, 1), (1, 1)),
        dimension_numbers=('NCHW', 'OIHW', 'NCHW'))
    y = y + bias[None, :, None, None]
    mean = jnp.mean(y, axis=(0, 2, 3), keepdims=True)
    var = jnp.mean((y - mean) ** 2, axis=(0, 2, 3), keepdims=True)
    y = (y - mean) * lax.rsqrt(var + eps) * gamma[None, :, None, None] + beta[None, :, None, None]
    y = jnp.maximum(y, 0.0)
    N, C, H, W = y.shape
    return y.reshape(N, C, H, W // 2, 2).max(axis=4)


if __name__ == "__main__":
    # Small shapes consistent with the module: ConvBlock(4, 8, 3)
    N, Cin, Cout, H, W, K = 2, 4, 8, 16, 16, 3

    key = jax.random.PRNGKey(0)
    kx, kw, kg = jax.random.split(key, 3)

    x = jax.random.normal(kx, (N, Cin, H, W), jnp.float32)

    # Deterministic parameter init mirroring maml_init_ / BatchNorm init:
    #   conv weight ~ xavier_uniform (gain=1), conv bias = 0,
    #   BN gamma ~ U(0,1), BN beta = 0.
    fan_in, fan_out = Cin * K * K, Cout * K * K
    bound = (6.0 / (fan_in + fan_out)) ** 0.5
    w = jax.random.uniform(kw, (Cout, Cin, K, K), jnp.float32, -bound, bound)
    b = jnp.zeros((Cout,), jnp.float32)
    gamma = jax.random.uniform(kg, (Cout,), jnp.float32, 0.0, 1.0)
    beta = jnp.zeros((Cout,), jnp.float32)

    # p_tile=128 -> grid = (2 passes, 2 P-tiles): exercises the multi-tile
    # cross-tile BN-stats accumulation path.
    out = conv_block_forward(x, w, b, gamma, beta, p_tile=128)
    out = jax.block_until_ready(out)

    assert out.shape == (N, Cout, H, W // 2), out.shape

    ref = reference_forward(x, w, b, gamma, beta)
    assert jnp.allclose(out, ref, atol=1e-4, rtol=1e-3), \
        float(jnp.max(jnp.abs(out - ref)))

    print("KERNEL_OK")
</pallas_src>

<mosaic_0001>
module attributes {stable_mosaic.version = 11 : i64} {
  func.func @kernel(%arg0: i32, %arg1: i32, %arg2: memref<8x40xf32, #tpu.memory_space<vmem>>, %arg3: memref<8x1xf32, #tpu.memory_space<vmem>>, %arg4: memref<8x1xf32, #tpu.memory_space<vmem>>, %arg5: memref<40x128xf32, #tpu.memory_space<vmem>>, %arg6: memref<40x128xf32, #tpu.memory_space<vmem>>, %arg7: memref<8x128xf32, #tpu.memory_space<vmem>>, %arg8: memref<8x1xf32, #tpu.memory_space<vmem>>, %arg9: memref<8x1xf32, #tpu.memory_space<vmem>>, %arg10: memref<8x1xf32, #tpu.memory_space<vmem>>, %arg11: memref<8x1xf32, #tpu.memory_space<vmem>>) attributes {dimension_semantics = [#tpu.dimension_semantics<arbitrary>, #tpu.dimension_semantics<arbitrary>], iteration_bounds = array<i64: 2, 2>, scalar_prefetch = 0 : i64, scratch_operands = 4 : i64, tpu.core_type = #tpu.core_type<tc>, window_params = [{pipeline_mode = #tpu.pipeline_mode<synchronous>, transform_indices = @transform_0, window_bounds = array<i64: 8, 40>}, {pipeline_mode = #tpu.pipeline_mode<synchronous>, transform_indices = @transform_1, window_bounds = array<i64: 8, 1>}, {pipeline_mode = #tpu.pipeline_mode<synchronous>, transform_indices = @transform_2, window_bounds = array<i64: 8, 1>}, {transform_indices = @transform_3, window_bounds = array<i64: 40, 128>}, {transform_indices = @transform_4, window_bounds = array<i64: 40, 128>}, {transform_indices = @transform_5, window_bounds = array<i64: 8, 128>}]} {
    %c0 = arith.constant 0 : index
    %c0_0 = arith.constant 0 : index
    %0 = vector.load %arg2[%c0, %c0_0] : memref<8x40xf32, #tpu.memory_space<vmem>>, vector<8x40xf32>
    %c0_1 = arith.constant 0 : index
    %c0_2 = arith.constant 0 : index
    %1 = vector.load %arg5[%c0_1, %c0_2] : memref<40x128xf32, #tpu.memory_space<vmem>>, vector<40x128xf32>
    %cst = arith.constant dense<0.000000e+00> : vector<8x128xf32>
    %2 = tpu.matmul %0, %1, %cst {dimension_numbers = #tpu.dot_dimension_numbers<[1], [0], [0], [1], [0, 0, 1, 1], [], []>} : vector<8x40xf32>, vector<40x128xf32>, vector<8x128xf32> -> vector<8x128xf32>
    %c0_3 = arith.constant 0 : index
    %c0_4 = arith.constant 0 : index
    %3 = vector.load %arg2[%c0_3, %c0_4] : memref<8x40xf32, #tpu.memory_space<vmem>>, vector<8x40xf32>
    %c0_5 = arith.constant 0 : index
    %c0_6 = arith.constant 0 : index
    %4 = vector.load %arg6[%c0_5, %c0_6] : memref<40x128xf32, #tpu.memory_space<vmem>>, vector<40x128xf32>
    %cst_7 = arith.constant dense<0.000000e+00> : vector<8x128xf32>
    %5 = tpu.matmul %3, %4, %cst_7 {dimension_numbers = #tpu.dot_dimension_numbers<[1], [0], [0], [1], [0, 0, 1, 1], [], []>} : vector<8x40xf32>, vector<40x128xf32>, vector<8x128xf32> -> vector<8x128xf32>
    %c0_i32 = arith.constant 0 : i32
    %6 = arith.cmpi eq, %arg0, %c0_i32 : i32
    %7 = arith.extui %6 : i1 to i32
    %c0_i32_8 = arith.constant 0 : i32
    %8 = arith.cmpi ne, %7, %c0_i32_8 : i32
    scf.if %8 {
      %c0_i32_10 = arith.constant 0 : i32
      %12 = arith.cmpi eq, %arg1, %c0_i32_10 : i32
      %13 = arith.extui %12 : i1 to i32
      %c0_i32_11 = arith.constant 0 : i32
      %14 = arith.cmpi ne, %13, %c0_i32_11 : i32
      scf.if %14 {
        %cst_26 = arith.constant 0.000000e+00 : f32
        %36 = vector.broadcast %cst_26 : f32 to vector<8x1xf32>
        %c0_27 = arith.constant 0 : index
        %c0_28 = arith.constant 0 : index
        %37 = vector.load %arg8[%c0_27, %c0_28] : memref<8x1xf32, #tpu.memory_space<vmem>>, vector<8x1xf32>
        tpu.vector_store %arg8[%c0_27, %c0_28], %36 {strides = array<i32>} : memref<8x1xf32, #tpu.memory_space<vmem>>, vector<8x1xf32>,
        %cst_29 = arith.constant 0.000000e+00 : f32
        %38 = vector.broadcast %cst_29 : f32 to vector<8x1xf32>
        %c0_30 = arith.constant 0 : index
        %c0_31 = arith.constant 0 : index
        %39 = vector.load %arg9[%c0_30, %c0_31] : memref<8x1xf32, #tpu.memory_space<vmem>>, vector<8x1xf32>
        tpu.vector_store %arg9[%c0_30, %c0_31], %38 {strides = array<i32>} : memref<8x1xf32, #tpu.memory_space<vmem>>, vector<8x1xf32>,
      } else {
      }
      %c0_12 = arith.constant 0 : index
      %c0_13 = arith.constant 0 : index
      %15 = vector.load %arg8[%c0_12, %c0_13] : memref<8x1xf32, #tpu.memory_space<vmem>>, vector<8x1xf32>
      %cst_14 = arith.constant dense<0.000000e+00> : vector<8xf32>
      %16 = vector.multi_reduction <add>, %2, %cst_14 [1] : vector<8x128xf32> to vector<8xf32>
      %17 = vector.shape_cast %16 : vector<8xf32> to vector<8x1xf32>
      %cst_15 = arith.constant dense<0.000000e+00> : vector<8xf32>
      %18 = vector.multi_reduction <add>, %5, %cst_15 [1] : vector<8x128xf32> to vector<8xf32>
      %19 = vector.shape_cast %18 : vector<8xf32> to vector<8x1xf32>
      %20 = arith.addf %17, %19 : vector<8x1xf32>
      %21 = arith.addf %15, %20 : vector<8x1xf32>
      %c0_16 = arith.constant 0 : index
      %c0_17 = arith.constant 0 : index
      %22 = vector.load %arg8[%c0_16, %c0_17] : memref<8x1xf32, #tpu.memory_space<vmem>>, vector<8x1xf32>
      tpu.vector_store %arg8[%c0_16, %c0_17], %21 {strides = array<i32>} : memref<8x1xf32, #tpu.memory_space<vmem>>, vector<8x1xf32>,
      %c0_18 = arith.constant 0 : index
      %c0_19 = arith.constant 0 : index
      %23 = vector.load %arg9[%c0_18, %c0_19] : memref<8x1xf32, #tpu.memory_space<vmem>>, vector<8x1xf32>
      %24 = arith.mulf %2, %2 : vector<8x128xf32>
      %cst_20 = arith.constant dense<0.000000e+00> : vector<8xf32>
      %25 = vector.multi_reduction <add>, %24, %cst_20 [1] : vector<8x128xf32> to vector<8xf32>
      %26 = vector.shape_cast %25 : vector<8xf32> to vector<8x1xf32>
      %27 = arith.mulf %5, %5 : vector<8x128xf32>
      %cst_21 = arith.constant dense<0.000000e+00> : vector<8xf32>
      %28 = vector.multi_reduction <add>, %27, %cst_21 [1] : vector<8x128xf32> to vector<8xf32>
      %29 = vector.shape_cast %28 : vector<8xf32> to vector<8x1xf32>
      %30 = arith.addf %26, %29 : vector<8x1xf32>
      %31 = arith.addf %23, %30 : vector<8x1xf32>
      %c0_22 = arith.constant 0 : index
      %c0_23 = arith.constant 0 : index
      %32 = vector.load %arg9[%c0_22, %c0_23] : memref<8x1xf32, #tpu.memory_space<vmem>>, vector<8x1xf32>
      tpu.vector_store %arg9[%c0_22, %c0_23], %31 {strides = array<i32>} : memref<8x1xf32, #tpu.memory_space<vmem>>, vector<8x1xf32>,
      %c1_i32_24 = arith.constant 1 : i32
      %33 = arith.cmpi eq, %arg1, %c1_i32_24 : i32
      %34 = arith.extui %33 : i1 to i32
      %c0_i32_25 = arith.constant 0 : i32
      %35 = arith.cmpi ne, %34, %c0_i32_25 : i32
      scf.if %35 {
        %c0_26 = arith.constant 0 : index
        %c0_27 = arith.constant 0 : index
        %36 = vector.load %arg8[%c0_26, %c0_27] : memref<8x1xf32, #tpu.memory_space<vmem>>, vector<8x1xf32>
        %cst_28 = arith.constant 0.001953125 : f32
        %37 = vector.broadcast %cst_28 : f32 to vector<8x1xf32>
        %38 = arith.mulf %36, %37 : vector<8x1xf32>
        %c0_29 = arith.constant 0 : index
        %c0_30 = arith.constant 0 : index
        %39 = vector.load %arg9[%c0_29, %c0_30] : memref<8x1xf32, #tpu.memory_space<vmem>>, vector<8x1xf32>
        %cst_31 = arith.constant 0.001953125 : f32
        %40 = vector.broadcast %cst_31 : f32 to vector<8x1xf32>
        %41 = arith.mulf %39, %40 : vector<8x1xf32>
        %42 = arith.mulf %38, %38 : vector<8x1xf32>
        %43 = arith.subf %41, %42 : vector<8x1xf32>
        %c0_32 = arith.constant 0 : index
        %c0_33 = arith.constant 0 : index
        %44 = vector.load %arg3[%c0_32, %c0_33] : memref<8x1xf32, #tpu.memory_space<vmem>>, vector<8x1xf32>
        %cst_34 = arith.constant 9.99999974E-6 : f32
        %45 = vector.broadcast %cst_34 : f32 to vector<8x1xf32>
        %46 = arith.addf %43, %45 : vector<8x1xf32>
        %47 = math.rsqrt %46 : vector<8x1xf32>
        %48 = arith.mulf %44, %47 : vector<8x1xf32>
        %c0_35 = arith.constant 0 : index
        %c0_36 = arith.constant 0 : index
        %49 = vector.load %arg10[%c0_35, %c0_36] : memref<8x1xf32, #tpu.memory_space<vmem>>, vector<8x1xf32>
        tpu.vector_store %arg10[%c0_35, %c0_36], %48 {strides = array<i32>} : memref<8x1xf32, #tpu.memory_space<vmem>>, vector<8x1xf32>,
        %c0_37 = arith.constant 0 : index
        %c0_38 = arith.constant 0 : index
        %50 = vector.load %arg4[%c0_37, %c0_38] : memref<8x1xf32, #tpu.memory_space<vmem>>, vector<8x1xf32>
        %51 = arith.mulf %38, %48 : vector<8x1xf32>
        %52 = arith.subf %50, %51 : vector<8x1xf32>
        %c0_39 = arith.constant 0 : index
        %c0_40 = arith.constant 0 : index
        %53 = vector.load %arg11[%c0_39, %c0_40] : memref<8x1xf32, #tpu.memory_space<vmem>>, vector<8x1xf32>
        tpu.vector_store %arg11[%c0_39, %c0_40], %52 {strides = array<i32>} : memref<8x1xf32, #tpu.memory_space<vmem>>, vector<8x1xf32>,
      } else {
      }
    } else {
    }
    %c1_i32 = arith.constant 1 : i32
    %9 = arith.cmpi eq, %arg0, %c1_i32 : i32
    %10 = arith.extui %9 : i1 to i32
    %c0_i32_9 = arith.constant 0 : i32
    %11 = arith.cmpi ne, %10, %c0_i32_9 : i32
    scf.if %11 {
      %c0_10 = arith.constant 0 : index
      %c0_11 = arith.constant 0 : index
      %12 = vector.load %arg10[%c0_10, %c0_11] : memref<8x1xf32, #tpu.memory_space<vmem>>, vector<8x1xf32>
      %c0_12 = arith.constant 0 : index
      %c0_13 = arith.constant 0 : index
      %13 = vector.load %arg11[%c0_12, %c0_13] : memref<8x1xf32, #tpu.memory_space<vmem>>, vector<8x1xf32>
      %14 = vector.broadcast %12 : vector<8x1xf32> to vector<8x128xf32>
      %15 = arith.mulf %2, %14 : vector<8x128xf32>
      %16 = vector.broadcast %13 : vector<8x1xf32> to vector<8x128xf32>
      %17 = arith.addf %15, %16 : vector<8x128xf32>
      %cst_14 = arith.constant 0.000000e+00 : f32
      %18 = vector.broadcast %cst_14 : f32 to vector<8x128xf32>
      %19 = arith.maximumf %17, %18 : vector<8x128xf32>
      %20 = vector.broadcast %12 : vector<8x1xf32> to vector<8x128xf32>
      %21 = arith.mulf %5, %20 : vector<8x128xf32>
      %22 = vector.broadcast %13 : vector<8x1xf32> to vector<8x128xf32>
      %23 = arith.addf %21, %22 : vector<8x128xf32>
      %cst_15 = arith.constant 0.000000e+00 : f32
      %24 = vector.broadcast %cst_15 : f32 to vector<8x128xf32>
      %25 = arith.maximumf %23, %24 : vector<8x128xf32>
      %26 = arith.maximumf %19, %25 : vector<8x128xf32>
      %c0_16 = arith.constant 0 : index
      %c0_17 = arith.constant 0 : index
      %27 = vector.load %arg7[%c0_16, %c0_17] : memref<8x128xf32, #tpu.memory_space<vmem>>, vector<8x128xf32>
      tpu.vector_store %arg7[%c0_16, %c0_17], %26 {strides = array<i32>} : memref<8x128xf32, #tpu.memory_space<vmem>>, vector<8x128xf32>,
    } else {
    }
    return
  }
  func.func @transform_0(%arg0: i32, %arg1: i32) -> (i32, i32) {
    %c0_i32 = arith.constant 0 : i32
    %c0_i32_0 = arith.constant 0 : i32
    %c0_i32_1 = arith.constant 0 : i32
    return %c0_i32, %c0_i32_0 : i32, i32
  }
  func.func @transform_1(%arg0: i32, %arg1: i32) -> (i32, i32) {
    %c0_i32 = arith.constant 0 : i32
    %c0_i32_0 = arith.constant 0 : i32
    %c0_i32_1 = arith.constant 0 : i32
    return %c0_i32, %c0_i32_0 : i32, i32
  }
  func.func @transform_2(%arg0: i32, %arg1: i32) -> (i32, i32) {
    %c0_i32 = arith.constant 0 : i32
    %c0_i32_0 = arith.constant 0 : i32
    %c0_i32_1 = arith.constant 0 : i32
    return %c0_i32, %c0_i32_0 : i32, i32
  }
  func.func @transform_3(%arg0: i32, %arg1: i32) -> (i32, i32) {
    %c0_i32 = arith.constant 0 : i32
    %c0_i32_0 = arith.constant 0 : i32
    return %c0_i32, %arg1 : i32, i32
  }
  func.func @transform_4(%arg0: i32, %arg1: i32) -> (i32, i32) {
    %c0_i32 = arith.constant 0 : i32
    %c0_i32_0 = arith.constant 0 : i32
    return %c0_i32, %arg1 : i32, i32
  }
  func.func @transform_5(%arg0: i32, %arg1: i32) -> (i32, i32) {
    %0 = arith.muli %arg1, %arg0 : i32
    %c0_i32 = arith.constant 0 : i32
    %c0_i32_0 = arith.constant 0 : i32
    return %c0_i32, %0 : i32, i32
  }
}

</mosaic_0001>

<llo_original>
// kernel: tpu_custom_call.1
$region0: #{tpu_custom_call.1}
  #allocation0 [shape = 'u32[]', space=smem, size = 0x4, offset = 0x4, fixed_abs, tag = 'smem constant byte address 0x4 - core index']
  #allocation1 [shape = 'u32[72,128]{1,0:T(1,128)}', space=vmem, size = 0x9000, scoped, tag = 'internal scratch']
  #allocation2 [shape = 'f32[8,1]{1,0:T(8,128)}', space=vmem, size = 0x1000, scoped, tag = 'scratch operand']
  #allocation3 [shape = 'f32[8,1]{1,0:T(8,128)}', space=vmem, size = 0x1000, scoped, tag = 'scratch operand']
  #allocation4 [shape = 'f32[8,1]{1,0:T(8,128)}', space=vmem, size = 0x1000, scoped, tag = 'scratch operand']
  #allocation5 [shape = 'f32[8,1]{1,0:T(8,128)}', space=vmem, size = 0x1000, scoped, tag = 'scratch operand']
  %s0 = inlined_call_operand.vmem [shape: f32[8,40], index: 0, kind: input, shape index: {}]
  %s1 = inlined_call_operand.vmem [shape: f32[8,1], index: 1, kind: input, shape index: {}]
  %s2 = inlined_call_operand.vmem [shape: f32[8,1], index: 2, kind: input, shape index: {}]
  %s3 = inlined_call_operand.hbm [shape: f32[40,256], index: 3, kind: input, shape index: {}]
  %s4 = inlined_call_operand.hbm [shape: f32[40,256], index: 4, kind: input, shape index: {}]
  %s5 = inlined_call_operand.hbm [shape: f32[8,256], index: 5, kind: output, shape index: {}]
  %s6 = sld [smem:[#allocation0]]
  $region77: #{tpu_custom_call.1} parent=0
    _
  %s8 = ssub.s32 1, %s6
  %s9 = scalar_select 0, %s8, %s6
  $region1: #{tpu_custom_call.1} parent=0
    #allocation6 [shape = 'u8[40960]{0}', space=vmem, size = 0xa000, scoped, tag = 'input window, operand 3']
    #allocation7 [shape = 's32[2]{0}', space=sflag, size = 0x8, scoped, tag = 'scoped memory for tpu_custom_call.1']
    #allocation8 [shape = 's32[2]{0}', space=sflag, size = 0x8, scoped, tag = 'scoped memory for tpu_custom_call.1']
    #allocation9 [shape = 'u8[40960]{0}', space=vmem, size = 0xa000, scoped, tag = 'input window, operand 4']
    #allocation10 [shape = 's32[2]{0}', space=sflag, size = 0x8, scoped, tag = 'scoped memory for tpu_custom_call.1']
    #allocation11 [shape = 'u8[8192]{0}', space=vmem, size = 0x2000, scoped, tag = 'output window, operand 0']
    %10 = vsyncpa [#allocation7], 0
    %s11 = scalar_lea.sflag [#allocation7], 1
    %12 = vsyncpa %s11, 0
    %13 = vsyncpa [#allocation10], 0
    %s14 = scalar_lea.sflag [#allocation10], 1
    %15 = vsyncpa %s14, 0
    %16 = vsyncpa [#allocation8], 0
    %s17 = scalar_lea.sflag [#allocation8], 1
    %18 = vsyncpa %s17, 0
    loop: start=0, step=1, limit=6
    $region2: #{tpu_custom_call.1} parent=1 // loop_pre_header
      _
    $region3: #{tpu_custom_call.1} parent=1 // loop_header
      %s20 = sphi 0, %s24
      %p21 = scmp.ge.s32.totalorder %s20, 6
      %s27 = sphi 0, %s39
      %s28 = sphi 0, %s35
      %s29 = sphi 0, %s27
      %s30 = sphi 0, %s28
      %s31 = sphi 0, %s29
      %s32 = sphi 0, %s30
      %s40 = sphi 0, %s40
      %s42 = sphi 0, %s40
      %s43 = sphi 0, %s42
      %s57 = sphi 0, %s43
      %s61 = sphi 0, %s61
      %s63 = sphi 0, %s61
      %s64 = sphi 0, %s63
      %s78 = sphi 0, %s64
      %s82 = sphi 0, %s82
      %s84 = sphi 0, %s82
      %s85 = sphi 0, %s84
      %s99 = sphi 0, %s85
      %s105 = sphi 0, %s107
      %s108 = sphi 0, %s105
      %s109 = sphi 0, %s108
      %s125 = sphi 0, %s109
      %s131 = sphi 0, %s133
      %s134 = sphi 0, %s131
      %s135 = sphi 0, %s134
      %s151 = sphi 0, %s135
      %s159 = sphi 0, %s161
      %s162 = sphi 0, %s159
      %s163 = sphi 0, %s162
      %s179 = sphi 0, %s163
    $region4: #{tpu_custom_call.1} parent=1 // loop_header_branch
      %23 = sbr.rel (%p21) target = $region8
    $region5: #{tpu_custom_call.1} parent=1 // loop_body
      %s25 = ssub.s32 %s20, 1
      %s26 = ssub.s32 %s20, 2
      %s33 = sadd.s32 1, %s28
      %p34 = scmp.ge.s32.totalorder %s33, 2
      %s35 = scalar_select %p34, 0, %s33
      %s36 = sadd.s32 1, %s27
      %s37 = scalar_select %p34, %s36, %s27
      %p38 = scmp.ge.s32.totalorder %s37, 2
      %s39 = scalar_select %p38, 0, %s37
      %s41 = sadd.s32 %s40, 1
      %p44 = scmp.eq.s32.totalorder %s20, 3
      %p45 = scmp.ne.s32.totalorder %s40, %s42
      %p46 = scmp.eq.s32.totalorder %s20, 0
      %p47 = por %p45, %p46
      %p48 = scmp.ne.s32.totalorder %s40, %s42
      %p49 = scmp.eq.s32.totalorder %s25, 3
      %p50 = por %p48, %p49
      %p51 = scmp.ne.s32.totalorder %s42, %s43
      %p52 = scmp.eq.s32.totalorder %s25, 0
      %p53 = por %p51, %p52
      %p54 = scmp.ne.s32.totalorder %s42, %s43
      %p55 = scmp.eq.s32.totalorder %s26, 3
      %p56 = por %p54, %p55
      %p58 = scmp.ne.s32.totalorder %s43, %s57
      %p59 = scmp.eq.s32.totalorder %s26, 0
      %p60 = por %p58, %p59
      %s62 = sadd.s32 %s61, 1
      %p65 = scmp.eq.s32.totalorder %s20, 3
      %p66 = scmp.ne.s32.totalorder %s61, %s63
      %p67 = scmp.eq.s32.totalorder %s20, 0
      %p68 = por %p66, %p67
      %p69 = scmp.ne.s32.totalorder %s61, %s63
      %p70 = scmp.eq.s32.totalorder %s25, 3
      %p71 = por %p69, %p70
      %p72 = scmp.ne.s32.totalorder %s63, %s64
      %p73 = scmp.eq.s32.totalorder %s25, 0
      %p74 = por %p72, %p73
      %p75 = scmp.ne.s32.totalorder %s63, %s64
      %p76 = scmp.eq.s32.totalorder %s26, 3
      %p77 = por %p75, %p76
      %p79 = scmp.ne.s32.totalorder %s64, %s78
      %p80 = scmp.eq.s32.totalorder %s26, 0
      %p81 = por %p79, %p80
      %s83 = sadd.s32 %s82, 1
      %p86 = scmp.eq.s32.totalorder %s20, 3
      %p87 = scmp.ne.s32.totalorder %s82, %s84
      %p88 = scmp.eq.s32.totalorder %s20, 0
      %p89 = por %p87, %p88
      %p90 = scmp.ne.s32.totalorder %s82, %s84
      %p91 = scmp.eq.s32.totalorder %s25, 3
      %p92 = por %p90, %p91
      %p93 = scmp.ne.s32.totalorder %s84, %s85
      %p94 = scmp.eq.s32.totalorder %s25, 0
      %p95 = por %p93, %p94
      %p96 = scmp.ne.s32.totalorder %s84, %s85
      %p97 = scmp.eq.s32.totalorder %s26, 3
      %p98 = por %p96, %p97
      %p100 = scmp.ne.s32.totalorder %s85, %s99
      %p101 = scmp.eq.s32.totalorder %s26, 0
      %p102 = por %p100, %p101
      %s103 = ssub.s32 %s28, %s35
      %p104 = scmp.eq.s32.totalorder %s103, 0
      %s106 = sadd.s32 %s105, 1
      %s107 = scalar_select %p104, %s105, %s106
      %p110 = pneg %p104
      %p111 = scmp.eq.s32.totalorder %s20, 3
      %p112 = por %p110, %p111
      %p113 = scmp.ne.s32.totalorder %s105, %s108
      %p114 = scmp.eq.s32.totalorder %s20, 0
      %p115 = por %p113, %p114
      %p116 = scmp.ne.s32.totalorder %s105, %s108
      %p117 = scmp.eq.s32.totalorder %s25, 3
      %p118 = por %p116, %p117
      %p119 = scmp.ne.s32.totalorder %s108, %s109
      %p120 = scmp.eq.s32.totalorder %s25, 0
      %p121 = por %p119, %p120
      %p122 = scmp.ne.s32.totalorder %s108, %s109
      %p123 = scmp.eq.s32.totalorder %s26, 3
      %p124 = por %p122, %p123
      %p126 = scmp.ne.s32.totalorder %s109, %s125
      %p127 = scmp.eq.s32.totalorder %s26, 0
      %p128 = por %p126, %p127
      %s129 = ssub.s32 %s28, %s35
      %p130 = scmp.eq.s32.totalorder %s129, 0
      %s132 = sadd.s32 %s131, 1
      %s133 = scalar_select %p130, %s131, %s132
      %p136 = pneg %p130
      %p137 = scmp.eq.s32.totalorder %s20, 3
      %p138 = por %p136, %p137
      %p139 = scmp.ne.s32.totalorder %s131, %s134
      %p140 = scmp.eq.s32.totalorder %s20, 0
      %p141 = por %p139, %p140
      %p142 = scmp.ne.s32.totalorder %s131, %s134
      %p143 = scmp.eq.s32.totalorder %s25, 3
      %p144 = por %p142, %p143
      %p145 = scmp.ne.s32.totalorder %s134, %s135
      %p146 = scmp.eq.s32.totalorder %s25, 0
      %p147 = por %p145, %p146
      %p148 = scmp.ne.s32.totalorder %s134, %s135
      %p149 = scmp.eq.s32.totalorder %s26, 3
      %p150 = por %p148, %p149
      %p152 = scmp.ne.s32.totalorder %s135, %s151
      %p153 = scmp.eq.s32.totalorder %s26, 0
      %p154 = por %p152, %p153
      %s155 = smul.u32 %s28, %s27
      %s156 = smul.u32 %s35, %s39
      %s157 = ssub.s32 %s155, %s156
      %p158 = scmp.eq.s32.totalorder %s157, 0
      %s160 = sadd.s32 %s159, 1
      %s161 = scalar_select %p158, %s159, %s160
      %p164 = pneg %p158
      %p165 = scmp.eq.s32.totalorder %s20, 3
      %p166 = por %p164, %p165
      %p167 = scmp.ne.s32.totalorder %s159, %s162
      %p168 = scmp.eq.s32.totalorder %s20, 0
      %p169 = por %p167, %p168
      %p170 = scmp.ne.s32.totalorder %s159, %s162
      %p171 = scmp.eq.s32.totalorder %s25, 3
      %p172 = por %p170, %p171
      %p173 = scmp.ne.s32.totalorder %s162, %s163
      %p174 = scmp.eq.s32.totalorder %s25, 0
      %p175 = por %p173, %p174
      %p176 = scmp.ne.s32.totalorder %s162, %s163
      %p177 = scmp.eq.s32.totalorder %s26, 3
      %p178 = por %p176, %p177
      %p180 = scmp.ne.s32.totalorder %s163, %s179
      %p181 = scmp.eq.s32.totalorder %s26, 0
      %p182 = por %p180, %p181
      %p183 = scmp.le.s32.totalorder 1, %s20
      %p184 = scmp.lt.s32.totalorder %s20, 5
      %p185 = pnand %p183, %p184
      %p186 = pneg %p185
      // Predicated region
      $region9: #{tpu_custom_call.1} parent=5 // pred_check
        _
      $region10: #{tpu_custom_call.1} parent=5 // pred_check_branch
        %188 = sbr.rel (%p185) target = $region12
      $region11: #{tpu_custom_call.1} parent=5 // pred_region
        %s189 = ssub.s32 %s20, 1
        // Predicated region
        $region13: #{tpu_custom_call.1} parent=11 // pred_check
          %p190 = pneg %p53
        $region14: #{tpu_custom_call.1} parent=11 // pred_check_branch
          %192 = sbr.rel (%p190) target = $region16
        $region15: #{tpu_custom_call.1} parent=11 // pred_region
          _
        $region16: #{tpu_custom_call.1} parent=11 // pred_fallthru
          _
        // Predicated region
        $region17: #{tpu_custom_call.1} parent=11 // pred_check
          %p193 = pneg %p74
        $region18: #{tpu_custom_call.1} parent=11 // pred_check_branch
          %195 = sbr.rel (%p193) target = $region20
        $region19: #{tpu_custom_call.1} parent=11 // pred_region
          _
        $region20: #{tpu_custom_call.1} parent=11 // pred_fallthru
          _
        // Predicated region
        $region21: #{tpu_custom_call.1} parent=11 // pred_check
          %p196 = pneg %p95
        $region22: #{tpu_custom_call.1} parent=11 // pred_check_branch
          %198 = sbr.rel (%p196) target = $region24
        $region23: #{tpu_custom_call.1} parent=11 // pred_region
          _
        $region24: #{tpu_custom_call.1} parent=11 // pred_fallthru
          _
      $region12: #{tpu_custom_call.1} parent=5 // pred_fallthru
        _
      %p199 = scmp.lt.s32.totalorder %s20, 4
      // Predicated region
      $region25: #{tpu_custom_call.1} parent=5 // pred_check
        %p200 = pneg %p199
      $region26: #{tpu_custom_call.1} parent=5 // pred_check_branch
        %202 = sbr.rel (%p200) target = $region28
      $region27: #{tpu_custom_call.1} parent=5 // pred_region
        // Predicated region
        $region29: #{tpu_custom_call.1} parent=27 // pred_check
          %p203 = pneg %p115
        $region30: #{tpu_custom_call.1} parent=27 // pred_check_branch
          %205 = sbr.rel (%p203) target = $region32
        $region31: #{tpu_custom_call.1} parent=27 // pred_region
          %s206 = sand.u32 %s105, 1
          %s207 = scalar_lea.sflag [#allocation7], %s206
          %s208 = sand.u32 %s105, 1
          %s209 = smul.addr %s208, 40
          %s210 = scalar_lea.vmem [#allocation6], %s209
          %212 = vsyncadd %s207, 0
          %s213 = smul.addr %s28, 8
          %s214 = scalar_lea.hbm %s3, %s213
          %s215 = sshll.u32 %s214, 4
          %s216 = int_to_ptr.hbm [resolvable:$true] %s215
          %s217 = sshll.u32 %s210, 4
          %s218 = int_to_ptr.vmem [resolvable:$true] %s217
          %223 = dma.hbm_to_vmem [thread:$0]  %s216, 640, %s218, %s207, 256, 128, 8
        $region32: #{tpu_custom_call.1} parent=27 // pred_fallthru
          _
        // Predicated region
        $region33: #{tpu_custom_call.1} parent=27 // pred_check
          %p224 = pneg %p141
        $region34: #{tpu_custom_call.1} parent=27 // pred_check_branch
          %226 = sbr.rel (%p224) target = $region36
        $region35: #{tpu_custom_call.1} parent=27 // pred_region
          %s227 = sand.u32 %s131, 1
          %s228 = scalar_lea.sflag [#allocation10], %s227
          %s229 = sand.u32 %s131, 1
          %s230 = smul.addr %s229, 40
          %s231 = scalar_lea.vmem [#allocation9], %s230
          %233 = vsyncadd %s228, 0
          %s234 = smul.addr %s28, 8
          %s235 = scalar_lea.hbm %s4, %s234
          %s236 = sshll.u32 %s235, 4
          %s237 = int_to_ptr.hbm [resolvable:$true] %s236
          %s238 = sshll.u32 %s231, 4
          %s239 = int_to_ptr.vmem [resolvable:$true] %s238
          %244 = dma.hbm_to_vmem [thread:$0]  %s237, 640, %s239, %s228, 256, 128, 8
        $region36: #{tpu_custom_call.1} parent=27 // pred_fallthru
          _
      $region28: #{tpu_custom_call.1} parent=5 // pred_fallthru
        _
      %p245 = scmp.le.s32.totalorder 1, %s20
      %p246 = scmp.lt.s32.totalorder %s20, 5
      %p247 = pnand %p245, %p246
      %p248 = pneg %p247
      // Predicated region
      $region37: #{tpu_custom_call.1} parent=5 // pred_check
        _
      $region38: #{tpu_custom_call.1} parent=5 // pred_check_branch
        %250 = sbr.rel (%p247) target = $region40
      $region39: #{tpu_custom_call.1} parent=5 // pred_region
        %s251 = ssub.s32 %s20, 1
        %s252 = sand.u32 %s108, 1
        %s253 = scalar_lea.sflag [#allocation7], %s252
        %s254 = sand.u32 %s108, 1
        %s255 = smul.addr %s254, 40
        %s256 = scalar_lea.vmem [#allocation6], %s255
        // Predicated region
        $region41: #{tpu_custom_call.1} parent=39 // pred_check
          %p257 = pneg %p121
        $region42: #{tpu_custom_call.1} parent=39 // pred_check_branch
          %259 = sbr.rel (%p257) target = $region44
        $region43: #{tpu_custom_call.1} parent=39 // pred_region
          %261 = dma.done %s253, 640
        $region44: #{tpu_custom_call.1} parent=39 // pred_fallthru
          _
        %s262 = sand.u32 %s134, 1
        %s263 = scalar_lea.sflag [#allocation10], %s262
        %s264 = sand.u32 %s134, 1
        %s265 = smul.addr %s264, 40
        %s266 = scalar_lea.vmem [#allocation9], %s265
        // Predicated region
        $region45: #{tpu_custom_call.1} parent=39 // pred_check
          %p267 = pneg %p147
        $region46: #{tpu_custom_call.1} parent=39 // pred_check_branch
          %269 = sbr.rel (%p267) target = $region48
        $region47: #{tpu_custom_call.1} parent=39 // pred_region
          %271 = dma.done %s263, 640
        $region48: #{tpu_custom_call.1} parent=39 // pred_fallthru
          _
        %p272 = pneg %p53
        %p273 = pneg %p50
        %p274 = pneg %p74
        %p275 = pneg %p71
        %p276 = pneg %p95
        %p277 = pneg %p92
        %s278 = sand.u32 %s108, 1
        %s279 = scalar_lea.sflag [#allocation7], %s278
        %s280 = sand.u32 %s108, 1
        %s281 = smul.addr %s280, 40
        %s282 = scalar_lea.vmem [#allocation6], %s281
        %p283 = pneg %p121
        %p284 = pneg %p118
        %s285 = sand.u32 %s134, 1
        %s286 = scalar_lea.sflag [#allocation10], %s285
        %s287 = sand.u32 %s134, 1
        %s288 = smul.addr %s287, 40
        %s289 = scalar_lea.vmem [#allocation9], %s288
        %p290 = pneg %p147
        %p291 = pneg %p144
        %p292 = pneg %p175
        %p293 = pneg %p172
        %s294 = sand.u32 %s162, 1
        %s295 = scalar_lea.sflag [#allocation8], %s294
        %s296 = sand.u32 %s162, 1
        %s297 = smul.addr %s296, 8
        %s298 = scalar_lea.vmem [#allocation11], %s297
        %s299 = smul.u32 %s30, %s29
        %v300 = vld [vmem:[%s0] sm:$0xff]
        %v301 = vld [vmem:[%s256] sm:$0xff]
        %v302 = vld [vmem:[%s256 + $0x8] sm:$0xff]
        %v303 = vld [vmem:[%s256 + $0x10] sm:$0xff]
        %v304 = vld [vmem:[%s256 + $0x18] sm:$0xff]
        %v305 = vld [vmem:[%s256 + $0x20] sm:$0xff]
        %vm306 = vcmask 326656
        %v308 = vsel %vm306, %v300, 0
        %310 = vmatpush.msra.mxu0 0.0
        %311 = vmatpush.msra.mxu0 0.0
        %312 = vmatpush.msra.mxu0 0.0
        %313 = vmatpush.msra.mxu0 0.0
        %314 = vmatpush.msra.mxu0 0.0
        %315 = vmatpush.msra.mxu0 0.0
        %316 = vmatpush.msra.mxu0 0.0
        %317 = vmatpush.msra.mxu0 0.0
        %318 = vmatpush.msra.mxu0 0.0
        %319 = vmatpush.msra.mxu0 0.0
        %320 = vmatpush.msra.mxu0 0.0
        %321 = vmatpush.msra.mxu0 %v305
        %322 = vmatpush.msra.mxu0 %v304
        %323 = vmatpush.msra.mxu0 %v303
        %324 = vmatpush.msra.mxu0 %v302
        %325 = vmatpush.msra.mxu0 %v301
        %326 = vmatmul.f32.gmra.mxu0 %v308
        %v327 = vpop.f32.mrf.mxu0
        %v328 = vadd.f32 0.0, %v327
        %329 = vdwg.mxu0
        %v330 = vld [vmem:[%s266] sm:$0xff]
        %v331 = vld [vmem:[%s266 + $0x8] sm:$0xff]
        %v332 = vld [vmem:[%s266 + $0x10] sm:$0xff]
        %v333 = vld [vmem:[%s266 + $0x18] sm:$0xff]
        %v334 = vld [vmem:[%s266 + $0x20] sm:$0xff]
        %335 = vmatpush.msra.mxu0 0.0
        %336 = vmatpush.msra.mxu0 0.0
        %337 = vmatpush.msra.mxu0 0.0
        %338 = vmatpush.msra.mxu0 0.0
        %339 = vmatpush.msra.mxu0 0.0
        %340 = vmatpush.msra.mxu0 0.0
        %341 = vmatpush.msra.mxu0 0.0
        %342 = vmatpush.msra.mxu0 0.0
        %343 = vmatpush.msra.mxu0 0.0
        %344 = vmatpush.msra.mxu0 0.0
        %345 = vmatpush.msra.mxu0 0.0
        %346 = vmatpush.msra.mxu0 %v334
        %347 = vmatpush.msra.mxu0 %v333
        %348 = vmatpush.msra.mxu0 %v332
        %349 = vmatpush.msra.mxu0 %v331
        %350 = vmatpush.msra.mxu0 %v330
        %351 = vmatmul.f32.gmra.mxu0 %v308
        %v352 = vpop.f32.mrf.mxu0
        %v353 = vadd.f32 0.0, %v352
        %354 = vdwg.mxu0
        %p355 = scmp.eq.s32.totalorder %s29, 0
        // Predicated region
        $region49: #{tpu_custom_call.1} parent=39 // pred_check
          %p356 = pneg %p355
        $region50: #{tpu_custom_call.1} parent=39 // pred_check_branch
          %358 = sbr.rel (%p356) target = $region52
        $region51: #{tpu_custom_call.1} parent=39 // pred_region
          %p359 = scmp.eq.s32.totalorder %s30, 0
          // Predicated region
          $region53: #{tpu_custom_call.1} parent=51 // pred_check
            %p360 = pneg %p359
          $region54: #{tpu_custom_call.1} parent=51 // pred_check_branch
            %362 = sbr.rel (%p360) target = $region56
          $region55: #{tpu_custom_call.1} parent=51 // pred_region
            %vm363 = vcmask 7168
            %364 = vst.msk [vmem:[#allocation2] sm:$0xff] %vm363, 0.0
            %365 = vst.msk [vmem:[#allocation3] sm:$0xff] %vm363, 0.0
          $region56: #{tpu_custom_call.1} parent=51 // pred_fallthru
            _
          %v366 = vld [vmem:[#allocation2] sm:$0xff]
          %367 = vadd.xlane.f32.xlu0 %v328
          %v368 = vpop.xlane.xlu0 %367
          %369 = vadd.xlane.f32.xlu0 %v353
          %v370 = vpop.xlane.xlu0 %369
          %v371 = vadd.f32 %v368, %v370
          %v372 = vadd.f32 %v366, %v371
          %vm373 = vcmask 7168
          %374 = vst.msk [vmem:[#allocation2] sm:$0xff] %vm373, %v372
          %v375 = vld [vmem:[#allocation3] sm:$0xff]
          %v376 = vmul.f32 %v328, %v328
          %377 = vadd.xlane.f32.xlu0 %v376
          %v378 = vpop.xlane.xlu0 %377
          %v379 = vmul.f32 %v353, %v353
          %380 = vadd.xlane.f32.xlu0 %v379
          %v381 = vpop.xlane.xlu0 %380
          %v382 = vadd.f32 %v378, %v381
          %v383 = vadd.f32 %v375, %v382
          %384 = vst.msk [vmem:[#allocation3] sm:$0xff] %vm373, %v383
          %p385 = scmp.eq.s32.totalorder %s30, 1
          // Predicated region
          $region57: #{tpu_custom_call.1} parent=51 // pred_check
            %p386 = pneg %p385
          $region58: #{tpu_custom_call.1} parent=51 // pred_check_branch
            %388 = sbr.rel (%p386) target = $region60
          $region59: #{tpu_custom_call.1} parent=51 // pred_region
            %v389 = vld [vmem:[#allocation2] sm:$0xff]
            %v390 = vmul.f32 %v389, 0.001953125
            %v391 = vld [vmem:[#allocation3] sm:$0xff]
            %v392 = vmul.f32 %v391, 0.001953125
            %v393 = vmul.f32 %v390, %v390
            %v394 = vsub.f32 %v392, %v393
            %v395 = vld [vmem:[%s1] sm:$0xff]
            %v396 = vadd.f32 %v394, 1e-05
            %v397 = vrsqrt.pop %v396
            %v398 = vmul.f32 %v397, %v396
            %v399 = vmul.f32 %v398, %v397
            %v400 = vmul.f32 0.5, %v399
            %v401 = vsub.f32 1.5, %v400
            %v402 = vmul.f32 %v397, %v401
            %vm403 = vweird.f32 %v396
            %vm404 = vweird.f32 %v397
            %vm405 = vmor %vm403, %vm404
            %v406 = vsel %vm405, %v397, %v402
            %v407 = vmul.f32 %v395, %v406
            %408 = vst.msk [vmem:[#allocation4] sm:$0xff] %vm373, %v407
            %v409 = vld [vmem:[%s2] sm:$0xff]
            %v410 = vmul.f32 %v390, %v407
            %v411 = vsub.f32 %v409, %v410
            %412 = vst.msk [vmem:[#allocation5] sm:$0xff] %vm373, %v411
          $region60: #{tpu_custom_call.1} parent=51 // pred_fallthru
            _
        $region52: #{tpu_custom_call.1} parent=39 // pred_fallthru
          _
        %p413 = scmp.eq.s32.totalorder %s29, 1
        // Predicated region
        $region61: #{tpu_custom_call.1} parent=39 // pred_check
          %p414 = pneg %p413
        $region62: #{tpu_custom_call.1} parent=39 // pred_check_branch
          %416 = sbr.rel (%p414) target = $region64
        $region63: #{tpu_custom_call.1} parent=39 // pred_region
          %v417 = vld [vmem:[#allocation4] sm:$0xff]
          %v418 = vld [vmem:[#allocation5] sm:$0xff]
          %420 = vset.pattern.permute.xlu0 0
          %421 = vperm.xlu0 %420, %v417
          %v422 = vpop.permute.xlu0 %421
          %v424 = vmul.f32 %v328, %v422
          %426 = vset.pattern.permute.xlu0 0
          %427 = vperm.xlu0 %426, %v418
          %v428 = vpop.permute.xlu0 %427
          %v430 = vadd.f32 %v424, %v428
          %v431 = vmax.f32 %v430, 0.0
          %v432 = vmul.f32 %v353, %v422
          %v433 = vadd.f32 %v432, %v428
          %v434 = vmax.f32 %v433, 0.0
          %v435 = vmax.f32 %v431, %v434
          %436 = vst [vmem:[%s298] sm:$0xff] %v435
        $region64: #{tpu_custom_call.1} parent=39 // pred_fallthru
          _
        %s437 = sand.u32 %s162, 1
        %s438 = scalar_lea.sflag [#allocation8], %s437
        %s439 = sand.u32 %s162, 1
        %s440 = smul.addr %s439, 8
        %s441 = scalar_lea.vmem [#allocation11], %s440
        // Predicated region
        $region65: #{tpu_custom_call.1} parent=39 // pred_check
          %p442 = pneg %p172
        $region66: #{tpu_custom_call.1} parent=39 // pred_check_branch
          %444 = sbr.rel (%p442) target = $region68
        $region67: #{tpu_custom_call.1} parent=39 // pred_region
          %s445 = smul.u32 %s30, %s29
          %447 = vsyncadd %s438, 0
          %s448 = smul.addr %s445, 8
          %s449 = scalar_lea.hbm %s5, %s448
          %s451 = sshll.u32 %s441, 4
          %s452 = int_to_ptr.vmem [resolvable:$true] %s451
          %s453 = sshll.u32 %s449, 4
          %s454 = int_to_ptr.hbm [resolvable:$true] %s453
          %456 = dma.vmem_to_hbm [thread:$0]  %s452, 128, %s454, %s438
        $region68: #{tpu_custom_call.1} parent=39 // pred_fallthru
          _
      $region40: #{tpu_custom_call.1} parent=5 // pred_fallthru
        _
      %p457 = scmp.le.s32.totalorder 2, %s20
      // Predicated region
      $region69: #{tpu_custom_call.1} parent=5 // pred_check
        %p458 = pneg %p457
      $region70: #{tpu_custom_call.1} parent=5 // pred_check_branch
        %460 = sbr.rel (%p458) target = $region72
      $region71: #{tpu_custom_call.1} parent=5 // pred_region
        %s461 = ssub.s32 %s20, 2
        // Predicated region
        $region73: #{tpu_custom_call.1} parent=71 // pred_check
          %p462 = pneg %p178
        $region74: #{tpu_custom_call.1} parent=71 // pred_check_branch
          %464 = sbr.rel (%p462) target = $region76
        $region75: #{tpu_custom_call.1} parent=71 // pred_region
          %s465 = sand.u32 %s163, 1
          %s466 = scalar_lea.sflag [#allocation8], %s465
          %s467 = sand.u32 %s163, 1
          %s468 = smul.addr %s467, 8
          %s469 = scalar_lea.vmem [#allocation11], %s468
          %471 = dma.done %s466, 128
        $region76: #{tpu_custom_call.1} parent=71 // pred_fallthru
          _
      $region72: #{tpu_custom_call.1} parent=5 // pred_fallthru
        _
    $region6: #{tpu_custom_call.1} parent=1 // loop_footer
      %s24 = sadd.s32 1, %s20
    $region7: #{tpu_custom_call.1} parent=1 // loop_footer_branch
      %19 = sbr.rel target = $region3
    $region8: #{tpu_custom_call.1} parent=1 // loop_exit
      _
    %472 = vsyncpa [#allocation7], 1
    %s473 = scalar_lea.sflag [#allocation7], 1
    %474 = vsyncpa %s473, 1
    %475 = vsyncpa [#allocation10], 1
    %s476 = scalar_lea.sflag [#allocation10], 1
    %477 = vsyncpa %s476, 1
    %478 = vsyncpa [#allocation8], 1
    %s479 = scalar_lea.sflag [#allocation8], 1
    %480 = vsyncpa %s479, 1

</llo_original>
